<compile_context>
chip_gen: v5e
topology: v5e:2x2
jax: 0.10.0
libtpu: 0.0.40
codegen_flags: <defaults>
</compile_context>

<pallas_src>
import jax
import jax.numpy as jnp
from jax.experimental import pallas as pl
from jax.experimental.pallas import tpu as pltpu

# ----------------------------- small config ---------------------------------
B = 16           # batch (CONFIG batch_size); must be a multiple of BB
BB = 8           # batch rows per grid step (f32 sublane tile); scale up for MXU M
S = 8            # sequence length
HB = 32          # "BERT" hidden size
HG = 32          # "GPT" hidden size (n_embd)
HC = HB + HG     # combined hidden (64)
MLP = 512        # classifier hidden (nn.Linear(combined, 512))
NUM_LABELS = 3
VOCAB = 128      # synthetic GPT vocab size (generation head output dim)
LPAD = 128       # lane width of the classifier region of the output slab
NFUSE = MLP + VOCAB        # 640: fused (classifier-l1 ++ generation-head) width
# packed-bias offsets (640 and 768 are 128-aligned)
OFF_BF = 0                 # fused bias  (b1 ++ bg),   width NFUSE = 640
OFF_B2 = NFUSE             # classifier-l2 bias slot,  width LPAD  = 128 (3 used)
OFF_BP = NFUSE + LPAD      # pooler bias,              width HB    = 32
BIAS_W = OFF_BP + HB       # 800


def hybrid_head_kernel(
    cls_tok_ref,   # [BB, HB]  f32   BERT CLS-token hidden state (sliced in wrapper)
    gpt_feat_ref,  # [BB, HG]  f32   GPT mean-pooled hidden state (pooled in wrapper)
    labels_ref,    # [BB, 1]   i32   classification labels
    w_pool_ref,    # [HB, HB]  bf16  BERT pooler weight
    w_fused_ref,   # [HC, NFUSE] bf16  K- and N-fused (classifier-l1 ++ gen-head)
    w2_ref,        # [MLP, NUM_LABELS] bf16  classifier layer-2 weight (un-padded)
    bias_ref,      # [1, BIAS_W] f32 packed biases: [b1 ++ bg | b2(3 used) | b_pool]
    out_ref,       # [BB, 2*LPAD] f32 out: [:, :3]=cls logits, [:, 3]=nll, [:, 128:]=gen
):
    b_fused = bias_ref[:, OFF_BF:OFF_BF + NFUSE]               # [1, 640]
    b2 = bias_ref[:, OFF_B2:OFF_B2 + NUM_LABELS]               # [1, 3]
    b_pool = bias_ref[:, OFF_BP:OFF_BP + HB]                   # [1, 32]

    # ---- BERT pooler_output: tanh(hidden[:, 0, :] @ W_pool + b_pool) --------
    bert_feat = jnp.tanh(
        jnp.dot(cls_tok_ref[...].astype(jnp.bfloat16), w_pool_ref[...],
                preferred_element_type=jnp.float32) + b_pool
    )                                                          # [BB, HB] f32
    # (dropout = identity in inference mode)
    gpt_feat = gpt_feat_ref[...]                               # [BB, HG] f32

    # ---- combined = concat(bert_feat, gpt_feat): one K=64 MXU push against
    # the K/N-fused (classifier-l1 ++ generation-head) weight, split at lane
    # 512 (128-aligned, free).
    comb = jnp.concatenate([bert_feat, gpt_feat], axis=-1)     # [BB, 64] f32
    h_fused = jnp.dot(comb.astype(jnp.bfloat16), w_fused_ref[...],
                      preferred_element_type=jnp.float32) + b_fused   # [BB, 640]
    h1 = jnp.maximum(h_fused[:, :MLP], 0.0)                    # [BB, 512]  ReLU
    gen_logits = h_fused[:, MLP:]                              # [BB, 128]  gen head

    # ---- classifier layer 2 on the un-padded [512, 3] weight ----------------
    logits = jnp.dot(h1.astype(jnp.bfloat16), w2_ref[...],
                     preferred_element_type=jnp.float32) + b2  # [BB, 3]

    # ---- per-example CrossEntropy (mean over batch taken in the wrapper) ----
    m = jnp.max(logits, axis=-1, keepdims=True)                # [BB, 1]
    lse = m + jnp.log(jnp.sum(jnp.exp(logits - m), axis=-1, keepdims=True))
    col = jax.lax.broadcasted_iota(jnp.int32, (BB, NUM_LABELS), 1)
    onehot = (col == labels_ref[...]).astype(jnp.float32)      # [BB, 3]
    picked = jnp.sum(onehot * logits, axis=-1, keepdims=True)  # [BB, 1]
    nll = lse - picked                                         # [BB, 1]

    # ---- lane-packed output slab --------------------------------------------
    out_ref[:, :LPAD] = jnp.zeros((BB, LPAD), jnp.float32)     # deterministic pad
    out_ref[:, 0:NUM_LABELS] = logits
    out_ref[:, NUM_LABELS:NUM_LABELS + 1] = nll
    out_ref[:, LPAD:] = gen_logits


def make_params(key):
    ks = jax.random.split(key, 9)
    scale = 0.02
    return {
        "bert_emb": scale * jax.random.normal(ks[0], (VOCAB, HB), jnp.float32),
        "gpt_emb":  scale * jax.random.normal(ks[1], (VOCAB, HG), jnp.float32),
        "w_pool":   scale * jax.random.normal(ks[2], (HB, HB), jnp.float32),
        "b_pool":   jnp.zeros((1, HB), jnp.float32),
        "w1_b":     scale * jax.random.normal(ks[3], (HB, MLP), jnp.float32),
        "w1_g":     scale * jax.random.normal(ks[4], (HG, MLP), jnp.float32),
        "b1":       scale * jax.random.normal(ks[5], (1, MLP), jnp.float32),
        "w2":       scale * jax.random.normal(ks[6], (MLP, NUM_LABELS), jnp.float32),
        "b2":       jnp.zeros((1, NUM_LABELS), jnp.float32),
        "wg_b":     scale * jax.random.normal(ks[7], (HB, VOCAB), jnp.float32),
        "wg_g":     scale * jax.random.normal(ks[8], (HG, VOCAB), jnp.float32),
        "bg":       jnp.zeros((1, VOCAB), jnp.float32),
    }


def pack_params(p):
    """One-time host-side weight fusion / bf16 cast (outside jit)."""
    # N-fuse (classifier-l1 ++ gen-head), then K-fuse (BERT rows ++ GPT rows).
    w_fused = jnp.concatenate(
        [jnp.concatenate([p["w1_b"], p["wg_b"]], axis=1),   # [HB, 640]
         jnp.concatenate([p["w1_g"], p["wg_g"]], axis=1)],  # [HG, 640]
        axis=0).astype(jnp.bfloat16)                         # [64, 640] bf16
    b2_pad = jnp.zeros((1, LPAD), jnp.float32).at[:, :NUM_LABELS].set(p["b2"])
    biases = jnp.concatenate([p["b1"], p["bg"], b2_pad, p["b_pool"]], axis=1)
    assert biases.shape == (1, BIAS_W)
    return {
        "bert_emb": p["bert_emb"], "gpt_emb": p["gpt_emb"],
        "w_pool": p["w_pool"].astype(jnp.bfloat16),          # [32, 32]   bf16
        "w_fused": w_fused,                                   # [64, 640]  bf16
        "w2": p["w2"].astype(jnp.bfloat16),                   # [512, 3]   bf16
        "biases": biases,                                     # [1, 800]   f32
    }


@jax.jit
def hybrid_forward(packed, input_ids, attention_mask, labels):
    """Mirrors HybridBERTGPTModel.forward (inference-mode dropout).

    Returns (loss, classification_logits, generation_logits) from a single
    fused kernel invocation; pick the pieces your task needs.
    """
    del attention_mask  # reference GPT mean-pool is unmasked (hidden.mean(dim=1))

    # Synthetic backbone hidden states (plain-JAX glue: embedding lookup).
    bert_hidden = packed["bert_emb"][input_ids]      # [B, S, HB]
    gpt_hidden = packed["gpt_emb"][input_ids]        # [B, S, HG]
    cls_tok = bert_hidden[:, 0, :]                   # [B, HB]  (CLS slice, fused by XLA)
    gpt_feat = jnp.mean(gpt_hidden, axis=1)          # [B, HG]  (mean-pool, fused by XLA)
    labels2d = labels.astype(jnp.int32).reshape(B, 1)

    const = lambda i: (0, 0)                         # weights: VMEM-resident across steps
    out = pl.pallas_call(
        hybrid_head_kernel,
        out_shape=jax.ShapeDtypeStruct((B, 2 * LPAD), jnp.float32),
        grid=(B // BB,),
        in_specs=[
            pl.BlockSpec((BB, HB), lambda i: (i, 0)),          # cls_tok
            pl.BlockSpec((BB, HG), lambda i: (i, 0)),          # gpt_feat
            pl.BlockSpec((BB, 1), lambda i: (i, 0)),           # labels
            pl.BlockSpec((HB, HB), const),                     # w_pool
            pl.BlockSpec((HC, NFUSE), const),                  # w_fused
            pl.BlockSpec((MLP, NUM_LABELS), const),            # w2
            pl.BlockSpec((1, BIAS_W), const),                  # biases
        ],
        out_specs=pl.BlockSpec((BB, 2 * LPAD), lambda i: (i, 0)),
        compiler_params=pltpu.CompilerParams(
            # batch steps are independent -> shard across v7x's 2 TensorCores;
            # total VMEM footprint <1 MiB, so no retile needed for 64 MiB VMEM.
            dimension_semantics=("parallel",)),
    )(cls_tok, gpt_feat, labels2d,
      packed["w_pool"], packed["w_fused"], packed["w2"], packed["biases"])

    cls_logits = out[:, :NUM_LABELS]                 # [B, 3]
    nll = out[:, NUM_LABELS]                         # [B]   per-example CE
    gen_logits = out[:, LPAD:]                       # [B, VOCAB]
    loss = jnp.mean(nll)                             # CrossEntropyLoss(mean)
    return loss, cls_logits, gen_logits


if __name__ == "__main__":
    key = jax.random.PRNGKey(0)
    pkey, ikey, lkey = jax.random.split(key, 3)

    params = make_params(pkey)
    packed = pack_params(params)
    input_ids = jax.random.randint(ikey, (B, S), 0, VOCAB, dtype=jnp.int32)
    attention_mask = jnp.ones((B, S), dtype=jnp.int32)
    labels = jax.random.randint(lkey, (B,), 0, NUM_LABELS, dtype=jnp.int32)

    # One jitted call serves both tasks (classification loss+logits, generation).
    loss, cls_logits, gen_logits = hybrid_forward(
        packed, input_ids, attention_mask, labels)

    jax.block_until_ready((loss, cls_logits, gen_logits))
    assert cls_logits.shape == (B, NUM_LABELS)
    assert gen_logits.shape == (B, VOCAB)
    assert jnp.isfinite(loss)
    print("KERNEL_OK")
</pallas_src>

<mosaic_0001>
module attributes {stable_mosaic.version = 11 : i64} {
  func.func @hybrid_head_kernel(%arg0: i32, %arg1: memref<8x32xf32, #tpu.memory_space<vmem>>, %arg2: memref<8x32xf32, #tpu.memory_space<vmem>>, %arg3: memref<8x1xi32, #tpu.memory_space<vmem>>, %arg4: memref<32x32xbf16, #tpu.memory_space<vmem>>, %arg5: memref<64x640xbf16, #tpu.memory_space<vmem>>, %arg6: memref<512x3xbf16, #tpu.memory_space<vmem>>, %arg7: memref<1x800xf32, #tpu.memory_space<vmem>>, %arg8: memref<8x256xf32, #tpu.memory_space<vmem>>) attributes {dimension_semantics = [#tpu.dimension_semantics<parallel>], iteration_bounds = array<i64: 2>, scalar_prefetch = 0 : i64, scratch_operands = 0 : i64, tpu.core_type = #tpu.core_type<tc>, window_params = [{transform_indices = @transform_0, window_bounds = array<i64: 8, 32>}, {transform_indices = @transform_1, window_bounds = array<i64: 8, 32>}, {transform_indices = @transform_2, window_bounds = array<i64: 8, 1>}, {pipeline_mode = #tpu.pipeline_mode<synchronous>, transform_indices = @transform_3, window_bounds = array<i64: 32, 32>}, {pipeline_mode = #tpu.pipeline_mode<synchronous>, transform_indices = @transform_4, window_bounds = array<i64: 64, 640>}, {pipeline_mode = #tpu.pipeline_mode<synchronous>, transform_indices = @transform_5, window_bounds = array<i64: 512, 3>}, {pipeline_mode = #tpu.pipeline_mode<synchronous>, transform_indices = @transform_6, window_bounds = array<i64: 1, 800>}, {transform_indices = @transform_7, window_bounds = array<i64: 8, 256>}]} {
    %c0 = arith.constant 0 : index
    %c0_0 = arith.constant 0 : index
    %0 = vector.load %arg7[%c0, %c0_0] : memref<1x800xf32, #tpu.memory_space<vmem>>, vector<1x640xf32>
    %c0_1 = arith.constant 0 : index
    %c640 = arith.constant 640 : index
    %1 = vector.load %arg7[%c0_1, %c640] : memref<1x800xf32, #tpu.memory_space<vmem>>, vector<1x3xf32>
    %c0_2 = arith.constant 0 : index
    %c768 = arith.constant 768 : index
    %2 = vector.load %arg7[%c0_2, %c768] : memref<1x800xf32, #tpu.memory_space<vmem>>, vector<1x32xf32>
    %c0_3 = arith.constant 0 : index
    %c0_4 = arith.constant 0 : index
    %3 = vector.load %arg1[%c0_3, %c0_4] : memref<8x32xf32, #tpu.memory_space<vmem>>, vector<8x32xf32>
    %4 = arith.truncf %3 : vector<8x32xf32> to vector<8x32xbf16>
    %c0_5 = arith.constant 0 : index
    %c0_6 = arith.constant 0 : index
    %5 = vector.load %arg4[%c0_5, %c0_6] : memref<32x32xbf16, #tpu.memory_space<vmem>>, vector<32x32xbf16>
    %cst = arith.constant dense<0.000000e+00> : vector<8x32xf32>
    %6 = tpu.matmul %4, %5, %cst {dimension_numbers = #tpu.dot_dimension_numbers<[1], [0], [0], [1], [0, 0, 1, 1], [], []>} : vector<8x32xbf16>, vector<32x32xbf16>, vector<8x32xf32> -> vector<8x32xf32>
    %7 = vector.broadcast %2 : vector<1x32xf32> to vector<8x32xf32>
    %8 = arith.addf %6, %7 : vector<8x32xf32>
    %9 = math.tanh %8 : vector<8x32xf32>
    %c0_7 = arith.constant 0 : index
    %c0_8 = arith.constant 0 : index
    %10 = vector.load %arg2[%c0_7, %c0_8] : memref<8x32xf32, #tpu.memory_space<vmem>>, vector<8x32xf32>
    %11 = tpu.concatenate %9, %10 in 1 : vector<8x32xf32>, vector<8x32xf32> -> vector<8x64xf32>
    %12 = arith.truncf %11 : vector<8x64xf32> to vector<8x64xbf16>
    %c0_9 = arith.constant 0 : index
    %c0_10 = arith.constant 0 : index
    %13 = vector.load %arg5[%c0_9, %c0_10] : memref<64x640xbf16, #tpu.memory_space<vmem>>, vector<64x640xbf16>
    %cst_11 = arith.constant dense<0.000000e+00> : vector<8x640xf32>
    %14 = tpu.matmul %12, %13, %cst_11 {dimension_numbers = #tpu.dot_dimension_numbers<[1], [0], [0], [1], [0, 0, 1, 1], [], []>} : vector<8x64xbf16>, vector<64x640xbf16>, vector<8x640xf32> -> vector<8x640xf32>
    %15 = vector.broadcast %0 : vector<1x640xf32> to vector<8x640xf32>
    %16 = arith.addf %14, %15 : vector<8x640xf32>
    %17 = vector.extract_strided_slice %16 {offsets = [0, 0], sizes = [8, 512], strides = [1, 1]} : vector<8x640xf32> to vector<8x512xf32>
    %cst_12 = arith.constant 0.000000e+00 : f32
    %18 = vector.broadcast %cst_12 : f32 to vector<8x512xf32>
    %19 = arith.maximumf %17, %18 : vector<8x512xf32>
    %20 = vector.extract_strided_slice %16 {offsets = [0, 512], sizes = [8, 128], strides = [1, 1]} : vector<8x640xf32> to vector<8x128xf32>
    %21 = arith.truncf %19 : vector<8x512xf32> to vector<8x512xbf16>
    %c0_13 = arith.constant 0 : index
    %c0_14 = arith.constant 0 : index
    %22 = vector.load %arg6[%c0_13, %c0_14] : memref<512x3xbf16, #tpu.memory_space<vmem>>, vector<512x3xbf16>
    %cst_15 = arith.constant dense<0.000000e+00> : vector<8x3xf32>
    %23 = tpu.matmul %21, %22, %cst_15 {dimension_numbers = #tpu.dot_dimension_numbers<[1], [0], [0], [1], [0, 0, 1, 1], [], []>} : vector<8x512xbf16>, vector<512x3xbf16>, vector<8x3xf32> -> vector<8x3xf32>
    %24 = vector.broadcast %1 : vector<1x3xf32> to vector<8x3xf32>
    %25 = arith.addf %23, %24 : vector<8x3xf32>
    %cst_16 = arith.constant dense<0xFF800000> : vector<8xf32>
    %26 = vector.multi_reduction <maximumf>, %25, %cst_16 [1] : vector<8x3xf32> to vector<8xf32>
    %27 = vector.shape_cast %26 : vector<8xf32> to vector<8x1xf32>
    %28 = vector.broadcast %27 : vector<8x1xf32> to vector<8x3xf32>
    %29 = arith.subf %25, %28 : vector<8x3xf32>
    %30 = math.exp %29 : vector<8x3xf32>
    %cst_17 = arith.constant dense<0.000000e+00> : vector<8xf32>
    %31 = vector.multi_reduction <add>, %30, %cst_17 [1] : vector<8x3xf32> to vector<8xf32>
    %32 = vector.shape_cast %31 : vector<8xf32> to vector<8x1xf32>
    %33 = math.log %32 : vector<8x1xf32>
    %34 = arith.addf %27, %33 : vector<8x1xf32>
    %35 = tpu.iota {dimensions = array<i32: 1>} : vector<8x3xi32>
    %c0_18 = arith.constant 0 : index
    %c0_19 = arith.constant 0 : index
    %36 = vector.load %arg3[%c0_18, %c0_19] : memref<8x1xi32, #tpu.memory_space<vmem>>, vector<8x1xi32>
    %37 = vector.broadcast %36 : vector<8x1xi32> to vector<8x3xi32>
    %38 = arith.cmpi eq, %35, %37 : vector<8x3xi32>
    %39 = arith.extui %38 : vector<8x3xi1> to vector<8x3xi32>
    %40 = arith.sitofp %39 : vector<8x3xi32> to vector<8x3xf32>
    %41 = arith.mulf %40, %25 : vector<8x3xf32>
    %cst_20 = arith.constant dense<0.000000e+00> : vector<8xf32>
    %42 = vector.multi_reduction <add>, %41, %cst_20 [1] : vector<8x3xf32> to vector<8xf32>
    %43 = vector.shape_cast %42 : vector<8xf32> to vector<8x1xf32>
    %44 = arith.subf %34, %43 : vector<8x1xf32>
    %cst_21 = arith.constant 0.000000e+00 : f32
    %45 = vector.broadcast %cst_21 : f32 to vector<8x128xf32>
    %c0_22 = arith.constant 0 : index
    %c0_23 = arith.constant 0 : index
    %46 = vector.load %arg8[%c0_22, %c0_23] : memref<8x256xf32, #tpu.memory_space<vmem>>, vector<8x128xf32>
    tpu.vector_store %arg8[%c0_22, %c0_23], %45 {strides = array<i32>} : memref<8x256xf32, #tpu.memory_space<vmem>>, vector<8x128xf32>,
    %c0_24 = arith.constant 0 : index
    %c0_25 = arith.constant 0 : index
    %47 = vector.load %arg8[%c0_24, %c0_25] : memref<8x256xf32, #tpu.memory_space<vmem>>, vector<8x3xf32>
    tpu.vector_store %arg8[%c0_24, %c0_25], %25 {strides = array<i32>} : memref<8x256xf32, #tpu.memory_space<vmem>>, vector<8x3xf32>,
    %c0_26 = arith.constant 0 : index
    %c3 = arith.constant 3 : index
    %48 = vector.load %arg8[%c0_26, %c3] : memref<8x256xf32, #tpu.memory_space<vmem>>, vector<8x1xf32>
    tpu.vector_store %arg8[%c0_26, %c3], %44 {strides = array<i32>} : memref<8x256xf32, #tpu.memory_space<vmem>>, vector<8x1xf32>,
    %c0_27 = arith.constant 0 : index
    %c128 = arith.constant 128 : index
    %49 = vector.load %arg8[%c0_27, %c128] : memref<8x256xf32, #tpu.memory_space<vmem>>, vector<8x128xf32>
    tpu.vector_store %arg8[%c0_27, %c128], %20 {strides = array<i32>} : memref<8x256xf32, #tpu.memory_space<vmem>>, vector<8x128xf32>,
    return
  }
  func.func @transform_0(%arg0: i32) -> (i32, i32) {
    %c0_i32 = arith.constant 0 : i32
    %c0_i32_0 = arith.constant 0 : i32
    return %arg0, %c0_i32 : i32, i32
  }
  func.func @transform_1(%arg0: i32) -> (i32, i32) {
    %c0_i32 = arith.constant 0 : i32
    %c0_i32_0 = arith.constant 0 : i32
    return %arg0, %c0_i32 : i32, i32
  }
  func.func @transform_2(%arg0: i32) -> (i32, i32) {
    %c0_i32 = arith.constant 0 : i32
    %c0_i32_0 = arith.constant 0 : i32
    return %arg0, %c0_i32 : i32, i32
  }
  func.func @transform_3(%arg0: i32) -> (i32, i32) {
    %c0_i32 = arith.constant 0 : i32
    %c0_i32_0 = arith.constant 0 : i32
    %c0_i32_1 = arith.constant 0 : i32
    return %c0_i32, %c0_i32_0 : i32, i32
  }
  func.func @transform_4(%arg0: i32) -> (i32, i32) {
    %c0_i32 = arith.constant 0 : i32
    %c0_i32_0 = arith.constant 0 : i32
    %c0_i32_1 = arith.constant 0 : i32
    return %c0_i32, %c0_i32_0 : i32, i32
  }
  func.func @transform_5(%arg0: i32) -> (i32, i32) {
    %c0_i32 = arith.constant 0 : i32
    %c0_i32_0 = arith.constant 0 : i32
    %c0_i32_1 = arith.constant 0 : i32
    return %c0_i32, %c0_i32_0 : i32, i32
  }
  func.func @transform_6(%arg0: i32) -> (i32, i32) {
    %c0_i32 = arith.constant 0 : i32
    %c0_i32_0 = arith.constant 0 : i32
    %c0_i32_1 = arith.constant 0 : i32
    return %c0_i32, %c0_i32_0 : i32, i32
  }
  func.func @transform_7(%arg0: i32) -> (i32, i32) {
    %c0_i32 = arith.constant 0 : i32
    %c0_i32_0 = arith.constant 0 : i32
    return %arg0, %c0_i32 : i32, i32
  }
}

</mosaic_0001>

<llo_original>
// kernel: hybrid_forward.1
$region0: #{hybrid_forward.1}
  #allocation0 [shape = 'u32[]', space=smem, size = 0x4, offset = 0x4, fixed_abs, tag = 'smem constant byte address 0x4 - core index']
  #allocation1 [shape = 'u32[72,128]{1,0:T(1,128)}', space=vmem, size = 0x9000, scoped, tag = 'internal scratch']
  %s0 = inlined_call_operand.vmem [shape: f32[16,32], index: 0, kind: input, shape index: {}]
  %s1 = inlined_call_operand.vmem [shape: f32[16,32], index: 1, kind: input, shape index: {}]
  %s2 = inlined_call_operand.vmem [shape: s32[16,1], index: 2, kind: input, shape index: {}]
  %s3 = inlined_call_operand.vmem [shape: bf16[32,32], index: 3, kind: input, shape index: {}]
  %s4 = inlined_call_operand.vmem [shape: bf16[64,640], index: 4, kind: input, shape index: {}]
  %s5 = inlined_call_operand.vmem [shape: bf16[512,3], index: 5, kind: input, shape index: {}]
  %s6 = inlined_call_operand.vmem [shape: f32[1,800], index: 6, kind: input, shape index: {}]
  %s7 = inlined_call_operand.vmem [shape: f32[16,256], index: 7, kind: output, shape index: {}]
  %s8 = sld [smem:[#allocation0]]
  $region61: #{hybrid_forward.1} parent=0
    _
  %s10 = ssub.s32 1, %s8
  %s11 = scalar_select 0, %s10, %s8
  loop: start=0, step=1, limit=4
  $region2: #{hybrid_forward.1} parent=0 // loop_pre_header
    _
  $region3: #{hybrid_forward.1} parent=0 // loop_header
    %s13 = sphi 0, %s17
    %p14 = scmp.ge.s32.totalorder %s13, 4
    %s23 = sphi 0, %s25
    %s26 = sphi 0, %s23
    %s27 = sphi 0, %s26
    %s43 = sphi 0, %s27
    %s49 = sphi 0, %s51
    %s52 = sphi 0, %s49
    %s53 = sphi 0, %s52
    %s69 = sphi 0, %s53
    %s75 = sphi 0, %s77
    %s78 = sphi 0, %s75
    %s79 = sphi 0, %s78
    %s95 = sphi 0, %s79
    %s99 = sphi 0, %s99
    %s101 = sphi 0, %s99
    %s102 = sphi 0, %s101
    %s116 = sphi 0, %s102
    %s120 = sphi 0, %s120
    %s122 = sphi 0, %s120
    %s123 = sphi 0, %s122
    %s137 = sphi 0, %s123
    %s141 = sphi 0, %s141
    %s143 = sphi 0, %s141
    %s144 = sphi 0, %s143
    %s158 = sphi 0, %s144
    %s162 = sphi 0, %s162
    %s164 = sphi 0, %s162
    %s165 = sphi 0, %s164
    %s179 = sphi 0, %s165
    %s185 = sphi 0, %s187
    %s188 = sphi 0, %s185
    %s189 = sphi 0, %s188
    %s205 = sphi 0, %s189
  $region4: #{hybrid_forward.1} parent=0 // loop_header_branch
    %16 = sbr.rel (%p14) target = $region8
  $region5: #{hybrid_forward.1} parent=0 // loop_body
    %s18 = ssub.s32 %s13, 1
    %s19 = ssub.s32 %s13, 2
    %s20 = sadd.s32 %s13, 1
    %s21 = ssub.s32 %s13, %s20
    %p22 = scmp.eq.s32.totalorder %s21, 0
    %s24 = sadd.s32 %s23, 1
    %s25 = scalar_select %p22, %s23, %s24
    %p28 = pneg %p22
    %p29 = scmp.eq.s32.totalorder %s13, 1
    %p30 = por %p28, %p29
    %p31 = scmp.ne.s32.totalorder %s23, %s26
    %p32 = scmp.eq.s32.totalorder %s13, 0
    %p33 = por %p31, %p32
    %p34 = scmp.ne.s32.totalorder %s23, %s26
    %p35 = scmp.eq.s32.totalorder %s18, 1
    %p36 = por %p34, %p35
    %p37 = scmp.ne.s32.totalorder %s26, %s27
    %p38 = scmp.eq.s32.totalorder %s18, 0
    %p39 = por %p37, %p38
    %p40 = scmp.ne.s32.totalorder %s26, %s27
    %p41 = scmp.eq.s32.totalorder %s19, 1
    %p42 = por %p40, %p41
    %p44 = scmp.ne.s32.totalorder %s27, %s43
    %p45 = scmp.eq.s32.totalorder %s19, 0
    %p46 = por %p44, %p45
    %s47 = ssub.s32 %s13, %s20
    %p48 = scmp.eq.s32.totalorder %s47, 0
    %s50 = sadd.s32 %s49, 1
    %s51 = scalar_select %p48, %s49, %s50
    %p54 = pneg %p48
    %p55 = scmp.eq.s32.totalorder %s13, 1
    %p56 = por %p54, %p55
    %p57 = scmp.ne.s32.totalorder %s49, %s52
    %p58 = scmp.eq.s32.totalorder %s13, 0
    %p59 = por %p57, %p58
    %p60 = scmp.ne.s32.totalorder %s49, %s52
    %p61 = scmp.eq.s32.totalorder %s18, 1
    %p62 = por %p60, %p61
    %p63 = scmp.ne.s32.totalorder %s52, %s53
    %p64 = scmp.eq.s32.totalorder %s18, 0
    %p65 = por %p63, %p64
    %p66 = scmp.ne.s32.totalorder %s52, %s53
    %p67 = scmp.eq.s32.totalorder %s19, 1
    %p68 = por %p66, %p67
    %p70 = scmp.ne.s32.totalorder %s53, %s69
    %p71 = scmp.eq.s32.totalorder %s19, 0
    %p72 = por %p70, %p71
    %s73 = ssub.s32 %s13, %s20
    %p74 = scmp.eq.s32.totalorder %s73, 0
    %s76 = sadd.s32 %s75, 1
    %s77 = scalar_select %p74, %s75, %s76
    %p80 = pneg %p74
    %p81 = scmp.eq.s32.totalorder %s13, 1
    %p82 = por %p80, %p81
    %p83 = scmp.ne.s32.totalorder %s75, %s78
    %p84 = scmp.eq.s32.totalorder %s13, 0
    %p85 = por %p83, %p84
    %p86 = scmp.ne.s32.totalorder %s75, %s78
    %p87 = scmp.eq.s32.totalorder %s18, 1
    %p88 = por %p86, %p87
    %p89 = scmp.ne.s32.totalorder %s78, %s79
    %p90 = scmp.eq.s32.totalorder %s18, 0
    %p91 = por %p89, %p90
    %p92 = scmp.ne.s32.totalorder %s78, %s79
    %p93 = scmp.eq.s32.totalorder %s19, 1
    %p94 = por %p92, %p93
    %p96 = scmp.ne.s32.totalorder %s79, %s95
    %p97 = scmp.eq.s32.totalorder %s19, 0
    %p98 = por %p96, %p97
    %s100 = sadd.s32 %s99, 1
    %p103 = scmp.eq.s32.totalorder %s13, 1
    %p104 = scmp.ne.s32.totalorder %s99, %s101
    %p105 = scmp.eq.s32.totalorder %s13, 0
    %p106 = por %p104, %p105
    %p107 = scmp.ne.s32.totalorder %s99, %s101
    %p108 = scmp.eq.s32.totalorder %s18, 1
    %p109 = por %p107, %p108
    %p110 = scmp.ne.s32.totalorder %s101, %s102
    %p111 = scmp.eq.s32.totalorder %s18, 0
    %p112 = por %p110, %p111
    %p113 = scmp.ne.s32.totalorder %s101, %s102
    %p114 = scmp.eq.s32.totalorder %s19, 1
    %p115 = por %p113, %p114
    %p117 = scmp.ne.s32.totalorder %s102, %s116
    %p118 = scmp.eq.s32.totalorder %s19, 0
    %p119 = por %p117, %p118
    %s121 = sadd.s32 %s120, 1
    %p124 = scmp.eq.s32.totalorder %s13, 1
    %p125 = scmp.ne.s32.totalorder %s120, %s122
    %p126 = scmp.eq.s32.totalorder %s13, 0
    %p127 = por %p125, %p126
    %p128 = scmp.ne.s32.totalorder %s120, %s122
    %p129 = scmp.eq.s32.totalorder %s18, 1
    %p130 = por %p128, %p129
    %p131 = scmp.ne.s32.totalorder %s122, %s123
    %p132 = scmp.eq.s32.totalorder %s18, 0
    %p133 = por %p131, %p132
    %p134 = scmp.ne.s32.totalorder %s122, %s123
    %p135 = scmp.eq.s32.totalorder %s19, 1
    %p136 = por %p134, %p135
    %p138 = scmp.ne.s32.totalorder %s123, %s137
    %p139 = scmp.eq.s32.totalorder %s19, 0
    %p140 = por %p138, %p139
    %s142 = sadd.s32 %s141, 1
    %p145 = scmp.eq.s32.totalorder %s13, 1
    %p146 = scmp.ne.s32.totalorder %s141, %s143
    %p147 = scmp.eq.s32.totalorder %s13, 0
    %p148 = por %p146, %p147
    %p149 = scmp.ne.s32.totalorder %s141, %s143
    %p150 = scmp.eq.s32.totalorder %s18, 1
    %p151 = por %p149, %p150
    %p152 = scmp.ne.s32.totalorder %s143, %s144
    %p153 = scmp.eq.s32.totalorder %s18, 0
    %p154 = por %p152, %p153
    %p155 = scmp.ne.s32.totalorder %s143, %s144
    %p156 = scmp.eq.s32.totalorder %s19, 1
    %p157 = por %p155, %p156
    %p159 = scmp.ne.s32.totalorder %s144, %s158
    %p160 = scmp.eq.s32.totalorder %s19, 0
    %p161 = por %p159, %p160
    %s163 = sadd.s32 %s162, 1
    %p166 = scmp.eq.s32.totalorder %s13, 1
    %p167 = scmp.ne.s32.totalorder %s162, %s164
    %p168 = scmp.eq.s32.totalorder %s13, 0
    %p169 = por %p167, %p168
    %p170 = scmp.ne.s32.totalorder %s162, %s164
    %p171 = scmp.eq.s32.totalorder %s18, 1
    %p172 = por %p170, %p171
    %p173 = scmp.ne.s32.totalorder %s164, %s165
    %p174 = scmp.eq.s32.totalorder %s18, 0
    %p175 = por %p173, %p174
    %p176 = scmp.ne.s32.totalorder %s164, %s165
    %p177 = scmp.eq.s32.totalorder %s19, 1
    %p178 = por %p176, %p177
    %p180 = scmp.ne.s32.totalorder %s165, %s179
    %p181 = scmp.eq.s32.totalorder %s19, 0
    %p182 = por %p180, %p181
    %s183 = ssub.s32 %s13, %s20
    %p184 = scmp.eq.s32.totalorder %s183, 0
    %s186 = sadd.s32 %s185, 1
    %s187 = scalar_select %p184, %s185, %s186
    %p190 = pneg %p184
    %p191 = scmp.eq.s32.totalorder %s13, 1
    %p192 = por %p190, %p191
    %p193 = scmp.ne.s32.totalorder %s185, %s188
    %p194 = scmp.eq.s32.totalorder %s13, 0
    %p195 = por %p193, %p194
    %p196 = scmp.ne.s32.totalorder %s185, %s188
    %p197 = scmp.eq.s32.totalorder %s18, 1
    %p198 = por %p196, %p197
    %p199 = scmp.ne.s32.totalorder %s188, %s189
    %p200 = scmp.eq.s32.totalorder %s18, 0
    %p201 = por %p199, %p200
    %p202 = scmp.ne.s32.totalorder %s188, %s189
    %p203 = scmp.eq.s32.totalorder %s19, 1
    %p204 = por %p202, %p203
    %p206 = scmp.ne.s32.totalorder %s189, %s205
    %p207 = scmp.eq.s32.totalorder %s19, 0
    %p208 = por %p206, %p207
    %p209 = scmp.le.s32.totalorder 1, %s13
    %p210 = scmp.lt.s32.totalorder %s13, 3
    %p211 = pnand %p209, %p210
    %p212 = pneg %p211
    // Predicated region
    $region9: #{hybrid_forward.1} parent=5 // pred_check
      _
    $region10: #{hybrid_forward.1} parent=5 // pred_check_branch
      %214 = sbr.rel (%p211) target = $region12
    $region11: #{hybrid_forward.1} parent=5 // pred_region
      %s215 = ssub.s32 %s13, 1
      // Predicated region
      $region13: #{hybrid_forward.1} parent=11 // pred_check
        %p216 = pneg %p112
      $region14: #{hybrid_forward.1} parent=11 // pred_check_branch
        %218 = sbr.rel (%p216) target = $region16
      $region15: #{hybrid_forward.1} parent=11 // pred_region
        _
      $region16: #{hybrid_forward.1} parent=11 // pred_fallthru
        _
      // Predicated region
      $region17: #{hybrid_forward.1} parent=11 // pred_check
        %p219 = pneg %p133
      $region18: #{hybrid_forward.1} parent=11 // pred_check_branch
        %221 = sbr.rel (%p219) target = $region20
      $region19: #{hybrid_forward.1} parent=11 // pred_region
        _
      $region20: #{hybrid_forward.1} parent=11 // pred_fallthru
        _
      // Predicated region
      $region21: #{hybrid_forward.1} parent=11 // pred_check
        %p222 = pneg %p154
      $region22: #{hybrid_forward.1} parent=11 // pred_check_branch
        %224 = sbr.rel (%p222) target = $region24
      $region23: #{hybrid_forward.1} parent=11 // pred_region
        _
      $region24: #{hybrid_forward.1} parent=11 // pred_fallthru
        _
      // Predicated region
      $region25: #{hybrid_forward.1} parent=11 // pred_check
        %p225 = pneg %p175
      $region26: #{hybrid_forward.1} parent=11 // pred_check_branch
        %227 = sbr.rel (%p225) target = $region28
      $region27: #{hybrid_forward.1} parent=11 // pred_region
        _
      $region28: #{hybrid_forward.1} parent=11 // pred_fallthru
        _
    $region12: #{hybrid_forward.1} parent=5 // pred_fallthru
      _
    %p228 = scmp.lt.s32.totalorder %s13, 2
    // Predicated region
    $region29: #{hybrid_forward.1} parent=5 // pred_check
      %p229 = pneg %p228
    $region30: #{hybrid_forward.1} parent=5 // pred_check_branch
      %231 = sbr.rel (%p229) target = $region32
    $region31: #{hybrid_forward.1} parent=5 // pred_region
      // Predicated region
      $region33: #{hybrid_forward.1} parent=31 // pred_check
        %p232 = pneg %p33
      $region34: #{hybrid_forward.1} parent=31 // pred_check_branch
        %234 = sbr.rel (%p232) target = $region36
      $region35: #{hybrid_forward.1} parent=31 // pred_region
        %p235 = scmp.lt.s32.totalorder %s13, 1
        %s236 = scalar_select %p235, %s13, 1
        %s237 = smul.addr %s236, 8
        %s238 = scalar_lea.vmem %s0, %s237
      $region36: #{hybrid_forward.1} parent=31 // pred_fallthru
        _
      // Predicated region
      $region37: #{hybrid_forward.1} parent=31 // pred_check
        %p239 = pneg %p59
      $region38: #{hybrid_forward.1} parent=31 // pred_check_branch
        %241 = sbr.rel (%p239) target = $region40
      $region39: #{hybrid_forward.1} parent=31 // pred_region
        %p242 = scmp.lt.s32.totalorder %s13, 1
        %s243 = scalar_select %p242, %s13, 1
        %s244 = smul.addr %s243, 8
        %s245 = scalar_lea.vmem %s1, %s244
      $region40: #{hybrid_forward.1} parent=31 // pred_fallthru
        _
      // Predicated region
      $region41: #{hybrid_forward.1} parent=31 // pred_check
        %p246 = pneg %p85
      $region42: #{hybrid_forward.1} parent=31 // pred_check_branch
        %248 = sbr.rel (%p246) target = $region44
      $region43: #{hybrid_forward.1} parent=31 // pred_region
        %p249 = scmp.lt.s32.totalorder %s13, 1
        %s250 = scalar_select %p249, %s13, 1
        %s251 = smul.addr %s250, 8
        %s252 = scalar_lea.vmem %s2, %s251
      $region44: #{hybrid_forward.1} parent=31 // pred_fallthru
        _
    $region32: #{hybrid_forward.1} parent=5 // pred_fallthru
      _
    %p253 = scmp.le.s32.totalorder 1, %s13
    %p254 = scmp.lt.s32.totalorder %s13, 3
    %p255 = pnand %p253, %p254
    %p256 = pneg %p255
    // Predicated region
    $region45: #{hybrid_forward.1} parent=5 // pred_check
      _
    $region46: #{hybrid_forward.1} parent=5 // pred_check_branch
      %258 = sbr.rel (%p255) target = $region48
    $region47: #{hybrid_forward.1} parent=5 // pred_region
      %s259 = ssub.s32 %s13, 1
      %p260 = scmp.lt.s32.totalorder %s18, 1
      %s261 = scalar_select %p260, %s18, 1
      %s262 = smul.addr %s261, 8
      %s263 = scalar_lea.vmem %s0, %s262
      %p264 = pneg %p39
      %p265 = pneg %p36
      %p266 = scmp.lt.s32.totalorder %s18, 1
      %s267 = scalar_select %p266, %s18, 1
      %s268 = smul.addr %s267, 8
      %s269 = scalar_lea.vmem %s1, %s268
      %p270 = pneg %p65
      %p271 = pneg %p62
      %p272 = scmp.lt.s32.totalorder %s18, 1
      %s273 = scalar_select %p272, %s18, 1
      %s274 = smul.addr %s273, 8
      %s275 = scalar_lea.vmem %s2, %s274
      %p276 = pneg %p91
      %p277 = pneg %p88
      %p278 = pneg %p112
      %p279 = pneg %p109
      %p280 = pneg %p133
      %p281 = pneg %p130
      %p282 = pneg %p154
      %p283 = pneg %p151
      %p284 = pneg %p175
      %p285 = pneg %p172
      %p286 = pneg %p201
      %p287 = pneg %p198
      %p288 = scmp.lt.s32.totalorder %s18, 1
      %s289 = scalar_select %p288, %s18, 1
      %s290 = smul.addr %s289, 2
      %s291 = smul.addr %s290, 8
      %s292 = scalar_lea.vmem %s7, %s291
      %p293 = scmp.lt.s32.totalorder %s18, 1
      %s294 = scalar_select %p293, %s18, 1
      %s295 = smul.addr %s294, 8
      %s296 = scalar_lea.vmem %s0, %s295
      %p297 = scmp.lt.s32.totalorder %s18, 1
      %s298 = scalar_select %p297, %s18, 1
      %s299 = smul.addr %s298, 8
      %s300 = scalar_lea.vmem %s1, %s299
      %p301 = scmp.lt.s32.totalorder %s18, 1
      %s302 = scalar_select %p301, %s18, 1
      %s303 = smul.addr %s302, 8
      %s304 = scalar_lea.vmem %s2, %s303
      %p305 = scmp.lt.s32.totalorder %s18, 1
      %s306 = scalar_select %p305, %s18, 1
      %s307 = smul.addr %s306, 2
      %s308 = smul.addr %s307, 8
      %s309 = scalar_lea.vmem %s7, %s308
      %v311 = vld [vmem:[%s6] sm:$0x1f]
      %v312 = vld [vmem:[%s6 + $0x5] sm:$0x1]
      %v313 = vld [vmem:[%s6 + $0x6] sm:$0x1]
      %v314 = vld [vmem:[%s296] sm:$0xff]
      %v315 = vpack.c.bf16 %v314, %v314
      %v316 = vld [vmem:[%s3] sm:$0xf]
      %v317 = vld [vmem:[%s3 + $0x4] sm:$0xf]
      %v318 = vld [vmem:[%s3 + $0x8] sm:$0xf]
      %v319 = vld [vmem:[%s3 + $0xc] sm:$0xf]
      %v321 = vperm.slane %v313, 0
      %v327 = vunpack.c.l.b16 %v316
      %v328 = vunpack.c.l.b16 %v317
      %v329 = vunpack.c.l.b16 %v318
      %v330 = vunpack.c.l.b16 %v319
      %v331 = vpack.c.b16 %v328, %v327
      %v332 = vpack.c.b16 %v330, %v329
      %vm335 = vcmask 261120
      %v337 = vsel %vm335, %v315, 0
      %339 = vmatpush.bf16.msra.mxu0 0
      %340 = vmatpush.bf16.msra.mxu0 0
      %341 = vmatpush.bf16.msra.mxu0 0
      %342 = vmatpush.bf16.msra.mxu0 0
      %343 = vmatpush.bf16.msra.mxu0 0
      %344 = vmatpush.bf16.msra.mxu0 0
      %345 = vmatpush.bf16.msra.mxu0 %v332
      %346 = vmatpush.bf16.msra.mxu0 %v331
      %347 = vmatmul.bf16.gmra.mxu0 %v337
      %v348 = vpop.f32.mrf.mxu0
      %v349 = vadd.f32 %v321, %v348
      %v350 = vpop.f32.mrf.mxu0
      %351 = vdwg.mxu0
      %v352 = vtanh.pop %v349
      %v353 = vld [vmem:[%s300] sm:$0xff]
      %355 = vrot.lane.b32.xlu0 %v353, 32
      %v356 = vpop.permute.xlu0 %355
      %v358 = vsel %vm335, %v352, %v356
      %v359 = vpack.c.bf16 %v358, %v358
      %v360 = vld [vmem:[%s4] sm:$0xff]
      %v361 = vld [vmem:[%s4 + $0x8] sm:$0xff]
      %v362 = vld [vmem:[%s4 + $0x10] sm:$0xf]
      %v363 = vld [vmem:[%s4 + $0x14] sm:$0xff]
      %v364 = vld [vmem:[%s4 + $0x1c] sm:$0xff]
      %v365 = vld [vmem:[%s4 + $0x24] sm:$0xf]
      %v366 = vld [vmem:[%s4 + $0x28] sm:$0xff]
      %v367 = vld [vmem:[%s4 + $0x30] sm:$0xff]
      %v368 = vld [vmem:[%s4 + $0x38] sm:$0xf]
      %v369 = vld [vmem:[%s4 + $0x3c] sm:$0xff]
      %v370 = vld [vmem:[%s4 + $0x44] sm:$0xff]
      %v371 = vld [vmem:[%s4 + $0x4c] sm:$0xf]
      %v372 = vld [vmem:[%s4 + $0x50] sm:$0xff]
      %v373 = vld [vmem:[%s4 + $0x58] sm:$0xff]
      %v374 = vld [vmem:[%s4 + $0x60] sm:$0xf]
      %v375 = vld [vmem:[%s4 + $0x64] sm:$0xff]
      %v376 = vld [vmem:[%s4 + $0x6c] sm:$0xff]
      %v377 = vld [vmem:[%s4 + $0x74] sm:$0xf]
      %v378 = vld [vmem:[%s4 + $0x78] sm:$0xff]
      %v379 = vld [vmem:[%s4 + $0x80] sm:$0xff]
      %v380 = vld [vmem:[%s4 + $0x88] sm:$0xf]
      %v381 = vld [vmem:[%s4 + $0x8c] sm:$0xff]
      %v382 = vld [vmem:[%s4 + $0x94] sm:$0xff]
      %v383 = vld [vmem:[%s4 + $0x9c] sm:$0xf]
      %v385 = vperm.slane %v311, 0
      %v386 = vperm.slane %v311, 1
      %v387 = vperm.slane %v311, 2
      %v388 = vperm.slane %v311, 3
      %v389 = vperm.slane %v311, 4
      %v419 = vunpack.c.l.b16 %v360
      %v420 = vunpack.c.h.b16 %v360
      %v421 = vunpack.c.l.b16 %v361
      %v422 = vunpack.c.h.b16 %v361
      %v423 = vunpack.c.l.b16 %v362
      %v424 = vunpack.c.l.b16 %v363
      %v425 = vunpack.c.h.b16 %v363
      %v426 = vunpack.c.l.b16 %v364
      %v427 = vunpack.c.h.b16 %v364
      %v428 = vunpack.c.l.b16 %v365
      %v429 = vunpack.c.l.b16 %v366
      %v430 = vunpack.c.h.b16 %v366
      %v431 = vunpack.c.l.b16 %v367
      %v432 = vunpack.c.h.b16 %v367
      %v433 = vunpack.c.l.b16 %v368
      %v434 = vunpack.c.l.b16 %v369
      %v435 = vunpack.c.h.b16 %v369
      %v436 = vunpack.c.l.b16 %v370
      %v437 = vunpack.c.h.b16 %v370
      %v438 = vunpack.c.l.b16 %v371
      %v439 = vunpack.c.l.b16 %v372
      %v440 = vunpack.c.h.b16 %v372
      %v441 = vunpack.c.l.b16 %v373
      %v442 = vunpack.c.h.b16 %v373
      %v443 = vunpack.c.l.b16 %v374
      %v444 = vunpack.c.l.b16 %v375
      %v445 = vunpack.c.h.b16 %v375
      %v446 = vunpack.c.l.b16 %v376
      %v447 = vunpack.c.h.b16 %v376
      %v448 = vunpack.c.l.b16 %v377
      %v449 = vunpack.c.l.b16 %v378
      %v450 = vunpack.c.h.b16 %v378
      %v451 = vunpack.c.l.b16 %v379
      %v452 = vunpack.c.h.b16 %v379
      %v453 = vunpack.c.l.b16 %v380
      %v454 = vunpack.c.l.b16 %v381
      %v455 = vunpack.c.h.b16 %v381
      %v456 = vunpack.c.l.b16 %v382
      %v457 = vunpack.c.h.b16 %v382
      %v458 = vunpack.c.l.b16 %v383
      %v459 = vpack.c.b16 %v424, %v419
      %v460 = vpack.c.b16 %v425, %v420
      %v461 = vpack.c.b16 %v426, %v421
      %v462 = vpack.c.b16 %v427, %v422
      %v463 = vpack.c.b16 %v428, %v423
      %v464 = vpack.c.b16 %v434, %v429
      %v465 = vpack.c.b16 %v435, %v430
      %v466 = vpack.c.b16 %v436, %v431
      %v467 = vpack.c.b16 %v437, %v432
      %v468 = vpack.c.b16 %v438, %v433
      %v469 = vpack.c.b16 %v444, %v439
      %v470 = vpack.c.b16 %v445, %v440
      %v471 = vpack.c.b16 %v446, %v441
      %v472 = vpack.c.b16 %v447, %v442
      %v473 = vpack.c.b16 %v448, %v443
      %v474 = vpack.c.b16 %v454, %v449
      %v475 = vpack.c.b16 %v455, %v450
      %v476 = vpack.c.b16 %v456, %v451
      %v477 = vpack.c.b16 %v457, %v452
      %v478 = vpack.c.b16 %v458, %v453
      %vm499 = vcmask 523264
      %v501 = vsel %vm499, %v359, 0
      %503 = vmatpush.bf16.msra.mxu0 0
      %504 = vmatpush.bf16.msra.mxu0 0
      %505 = vmatpush.bf16.msra.mxu0 0
      %506 = vmatpush.bf16.msra.mxu0 0
      %507 = vmatpush.bf16.msra.mxu0 %v474
      %508 = vmatpush.bf16.msra.mxu0 %v469
      %509 = vmatpush.bf16.msra.mxu0 %v464
      %510 = vmatpush.bf16.msra.mxu0 %v459
      %511 = vmatmul.bf16.gmra.mxu0 %v501
      %v512 = vpop.f32.mrf.mxu0
      %v513 = vadd.f32 %v385, %v512
      %v514 = vpop.f32.mrf.mxu0
      %515 = vdwg.mxu0
      %516 = vmatpush.bf16.msra.mxu0 0
      %517 = vmatpush.bf16.msra.mxu0 0
      %518 = vmatpush.bf16.msra.mxu0 0
      %519 = vmatpush.bf16.msra.mxu0 0
      %520 = vmatpush.bf16.msra.mxu0 %v475
      %521 = vmatpush.bf16.msra.mxu0 %v470
      %522 = vmatpush.bf16.msra.mxu0 %v465
      %523 = vmatpush.bf16.msra.mxu0 %v460
      %524 = vmatmul.bf16.gmra.mxu0 %v501
      %v525 = vpop.f32.mrf.mxu0
      %v526 = vadd.f32 %v386, %v525
      %v527 = vpop.f32.mrf.mxu0
      %528 = vdwg.mxu0
      %529 = vmatpush.bf16.msra.mxu0 0
      %530 = vmatpush.bf16.msra.mxu0 0
      %531 = vmatpush.bf16.msra.mxu0 0
      %532 = vmatpush.bf16.msra.mxu0 0
      %533 = vmatpush.bf16.msra.mxu0 %v476
      %534 = vmatpush.bf16.msra.mxu0 %v471
      %535 = vmatpush.bf16.msra.mxu0 %v466
      %536 = vmatpush.bf16.msra.mxu0 %v461
      %537 = vmatmul.bf16.gmra.mxu0 %v501
      %v538 = vpop.f32.mrf.mxu0
      %v539 = vadd.f32 %v387, %v538
      %v540 = vpop.f32.mrf.mxu0
      %541 = vdwg.mxu0
      %542 = vmatpush.bf16.msra.mxu0 0
      %543 = vmatpush.bf16.msra.mxu0 0
      %544 = vmatpush.bf16.msra.mxu0 0
      %545 = vmatpush.bf16.msra.mxu0 0
      %546 = vmatpush.bf16.msra.mxu0 %v477
      %547 = vmatpush.bf16.msra.mxu0 %v472
      %548 = vmatpush.bf16.msra.mxu0 %v467
      %549 = vmatpush.bf16.msra.mxu0 %v462
      %550 = vmatmul.bf16.gmra.mxu0 %v501
      %v551 = vpop.f32.mrf.mxu0
      %v552 = vadd.f32 %v388, %v551
      %v553 = vpop.f32.mrf.mxu0
      %554 = vdwg.mxu0
      %555 = vmatpush.bf16.msra.mxu0 0
      %556 = vmatpush.bf16.msra.mxu0 0
      %557 = vmatpush.bf16.msra.mxu0 0
      %558 = vmatpush.bf16.msra.mxu0 0
      %559 = vmatpush.bf16.msra.mxu0 %v478
      %560 = vmatpush.bf16.msra.mxu0 %v473
      %561 = vmatpush.bf16.msra.mxu0 %v468
      %562 = vmatpush.bf16.msra.mxu0 %v463
      %563 = vmatmul.bf16.gmra.mxu0 %v501
      %v564 = vpop.f32.mrf.mxu0
      %v565 = vadd.f32 %v389, %v564
      %v566 = vpop.f32.mrf.mxu0
      %567 = vdwg.mxu0
      %v568 = vmax.f32 %v513, 0.0
      %v569 = vmax.f32 %v526, 0.0
      %v570 = vmax.f32 %v539, 0.0
      %v571 = vmax.f32 %v552, 0.0
      %v572 = vpack.c.bf16 %v568, %v568
      %v573 = vpack.c.bf16 %v569, %v569
      %v574 = vpack.c.bf16 %v570, %v570
      %v575 = vpack.c.bf16 %v571, %v571
      %v576 = vld [vmem:[%s5] sm:$0xf]
      %v577 = vld [vmem:[%s5 + $0x4] sm:$0xf]
      %v578 = vld [vmem:[%s5 + $0x8] sm:$0xf]
      %v579 = vld [vmem:[%s5 + $0xc] sm:$0xf]
      %v580 = vld [vmem:[%s5 + $0x10] sm:$0xf]
      %v581 = vld [vmem:[%s5 + $0x14] sm:$0xf]
      %v582 = vld [vmem:[%s5 + $0x18] sm:$0xf]
      %v583 = vld [vmem:[%s5 + $0x1c] sm:$0xf]
      %v584 = vld [vmem:[%s5 + $0x20] sm:$0xf]
      %v585 = vld [vmem:[%s5 + $0x24] sm:$0xf]
      %v586 = vld [vmem:[%s5 + $0x28] sm:$0xf]
      %v587 = vld [vmem:[%s5 + $0x2c] sm:$0xf]
      %v588 = vld [vmem:[%s5 + $0x30] sm:$0xf]
      %v589 = vld [vmem:[%s5 + $0x34] sm:$0xf]
      %v590 = vld [vmem:[%s5 + $0x38] sm:$0xf]
      %v591 = vld [vmem:[%s5 + $0x3c] sm:$0xf]
      %v592 = vld [vmem:[%s5 + $0x40] sm:$0xf]
      %v593 = vld [vmem:[%s5 + $0x44] sm:$0xf]
      %v594 = vld [vmem:[%s5 + $0x48] sm:$0xf]
      %v595 = vld [vmem:[%s5 + $0x4c] sm:$0xf]
      %v596 = vld [vmem:[%s5 + $0x50] sm:$0xf]
      %v597 = vld [vmem:[%s5 + $0x54] sm:$0xf]
      %v598 = vld [vmem:[%s5 + $0x58] sm:$0xf]
      %v599 = vld [vmem:[%s5 + $0x5c] sm:$0xf]
      %v600 = vld [vmem:[%s5 + $0x60] sm:$0xf]
      %v601 = vld [vmem:[%s5 + $0x64] sm:$0xf]
      %v602 = vld [vmem:[%s5 + $0x68] sm:$0xf]
      %v603 = vld [vmem:[%s5 + $0x6c] sm:$0xf]
      %v604 = vld [vmem:[%s5 + $0x70] sm:$0xf]
      %v605 = vld [vmem:[%s5 + $0x74] sm:$0xf]
      %v606 = vld [vmem:[%s5 + $0x78] sm:$0xf]
      %v607 = vld [vmem:[%s5 + $0x7c] sm:$0xf]
      %v608 = vld [vmem:[%s5 + $0x80] sm:$0xf]
      %v609 = vld [vmem:[%s5 + $0x84] sm:$0xf]
      %v610 = vld [vmem:[%s5 + $0x88] sm:$0xf]
      %v611 = vld [vmem:[%s5 + $0x8c] sm:$0xf]
      %v612 = vld [vmem:[%s5 + $0x90] sm:$0xf]
      %v613 = vld [vmem:[%s5 + $0x94] sm:$0xf]
      %v614 = vld [vmem:[%s5 + $0x98] sm:$0xf]
      %v615 = vld [vmem:[%s5 + $0x9c] sm:$0xf]
      %v616 = vld [vmem:[%s5 + $0xa0] sm:$0xf]
      %v617 = vld [vmem:[%s5 + $0xa4] sm:$0xf]
      %v618 = vld [vmem:[%s5 + $0xa8] sm:$0xf]
      %v619 = vld [vmem:[%s5 + $0xac] sm:$0xf]
      %v620 = vld [vmem:[%s5 + $0xb0] sm:$0xf]
      %v621 = vld [vmem:[%s5 + $0xb4] sm:$0xf]
      %v622 = vld [vmem:[%s5 + $0xb8] sm:$0xf]
      %v623 = vld [vmem:[%s5 + $0xbc] sm:$0xf]
      %v624 = vld [vmem:[%s5 + $0xc0] sm:$0xf]
      %v625 = vld [vmem:[%s5 + $0xc4] sm:$0xf]
      %v626 = vld [vmem:[%s5 + $0xc8] sm:$0xf]
      %v627 = vld [vmem:[%s5 + $0xcc] sm:$0xf]
      %v628 = vld [vmem:[%s5 + $0xd0] sm:$0xf]
      %v629 = vld [vmem:[%s5 + $0xd4] sm:$0xf]
      %v630 = vld [vmem:[%s5 + $0xd8] sm:$0xf]
      %v631 = vld [vmem:[%s5 + $0xdc] sm:$0xf]
      %v632 = vld [vmem:[%s5 + $0xe0] sm:$0xf]
      %v633 = vld [vmem:[%s5 + $0xe4] sm:$0xf]
      %v634 = vld [vmem:[%s5 + $0xe8] sm:$0xf]
      %v635 = vld [vmem:[%s5 + $0xec] sm:$0xf]
      %v636 = vld [vmem:[%s5 + $0xf0] sm:$0xf]
      %v637 = vld [vmem:[%s5 + $0xf4] sm:$0xf]
      %v638 = vld [vmem:[%s5 + $0xf8] sm:$0xf]
      %v639 = vld [vmem:[%s5 + $0xfc] sm:$0xf]
      %v641 = vperm.slane %v312, 0
      %v707 = vunpack.c.l.b16 %v576
      %v708 = vunpack.c.l.b16 %v577
      %v709 = vunpack.c.l.b16 %v578
      %v710 = vunpack.c.l.b16 %v579
      %v711 = vunpack.c.l.b16 %v580
      %v712 = vunpack.c.l.b16 %v581
      %v713 = vunpack.c.l.b16 %v582
      %v714 = vunpack.c.l.b16 %v583
      %v715 = vunpack.c.l.b16 %v584
      %v716 = vunpack.c.l.b16 %v585
      %v717 = vunpack.c.l.b16 %v586
      %v718 = vunpack.c.l.b16 %v587
      %v719 = vunpack.c.l.b16 %v588
      %v720 = vunpack.c.l.b16 %v589
      %v721 = vunpack.c.l.b16 %v590
      %v722 = vunpack.c.l.b16 %v591
      %v723 = vunpack.c.l.b16 %v592
      %v724 = vunpack.c.l.b16 %v593
      %v725 = vunpack.c.l.b16 %v594
      %v726 = vunpack.c.l.b16 %v595
      %v727 = vunpack.c.l.b16 %v596
      %v728 = vunpack.c.l.b16 %v597
      %v729 = vunpack.c.l.b16 %v598
      %v730 = vunpack.c.l.b16 %v599
      %v731 = vunpack.c.l.b16 %v600
      %v732 = vunpack.c.l.b16 %v601
      %v733 = vunpack.c.l.b16 %v602
      %v734 = vunpack.c.l.b16 %v603
      %v735 = vunpack.c.l.b16 %v604
      %v736 = vunpack.c.l.b16 %v605
      %v737 = vunpack.c.l.b16 %v606
      %v738 = vunpack.c.l.b16 %v607
      %v739 = vunpack.c.l.b16 %v608
      %v740 = vunpack.c.l.b16 %v609
      %v741 = vunpack.c.l.b16 %v610
      %v742 = vunpack.c.l.b16 %v611
      %v743 = vunpack.c.l.b16 %v612
      %v744 = vunpack.c.l.b16 %v613
      %v745 = vunpack.c.l.b16 %v614
      %v746 = vunpack.c.l.b16 %v615
      %v747 = vunpack.c.l.b16 %v616
      %v748 = vunpack.c.l.b16 %v617
      %v749 = vunpack.c.l.b16 %v618
      %v750 = vunpack.c.l.b16 %v619
      %v751 = vunpack.c.l.b16 %v620
      %v752 = vunpack.c.l.b16 %v621
      %v753 = vunpack.c.l.b16 %v622
      %v754 = vunpack.c.l.b16 %v623
      %v755 = vunpack.c.l.b16 %v624
      %v756 = vunpack.c.l.b16 %v625
      %v757 = vunpack.c.l.b16 %v626
      %v758 = vunpack.c.l.b16 %v627
      %v759 = vunpack.c.l.b16 %v628
      %v760 = vunpack.c.l.b16 %v629
      %v761 = vunpack.c.l.b16 %v630
      %v762 = vunpack.c.l.b16 %v631
      %v763 = vunpack.c.l.b16 %v632
      %v764 = vunpack.c.l.b16 %v633
      %v765 = vunpack.c.l.b16 %v634
      %v766 = vunpack.c.l.b16 %v635
      %v767 = vunpack.c.l.b16 %v636
      %v768 = vunpack.c.l.b16 %v637
      %v769 = vunpack.c.l.b16 %v638
      %v770 = vunpack.c.l.b16 %v639
      %v771 = vpack.c.b16 %v708, %v707
      %v772 = vpack.c.b16 %v710, %v709
      %v773 = vpack.c.b16 %v712, %v711
      %v774 = vpack.c.b16 %v714, %v713
      %v775 = vpack.c.b16 %v716, %v715
      %v776 = vpack.c.b16 %v718, %v717
      %v777 = vpack.c.b16 %v720, %v719
      %v778 = vpack.c.b16 %v722, %v721
      %v779 = vpack.c.b16 %v724, %v723
      %v780 = vpack.c.b16 %v726, %v725
      %v781 = vpack.c.b16 %v728, %v727
      %v782 = vpack.c.b16 %v730, %v729
      %v783 = vpack.c.b16 %v732, %v731
      %v784 = vpack.c.b16 %v734, %v733
      %v785 = vpack.c.b16 %v736, %v735
      %v786 = vpack.c.b16 %v738, %v737
      %v787 = vpack.c.b16 %v740, %v739
      %v788 = vpack.c.b16 %v742, %v741
      %v789 = vpack.c.b16 %v744, %v743
      %v790 = vpack.c.b16 %v746, %v745
      %v791 = vpack.c.b16 %v748, %v747
      %v792 = vpack.c.b16 %v750, %v749
      %v793 = vpack.c.b16 %v752, %v751
      %v794 = vpack.c.b16 %v754, %v753
      %v795 = vpack.c.b16 %v756, %v755
      %v796 = vpack.c.b16 %v758, %v757
      %v797 = vpack.c.b16 %v760, %v759
      %v798 = vpack.c.b16 %v762, %v761
      %v799 = vpack.c.b16 %v764, %v763
      %v800 = vpack.c.b16 %v766, %v765
      %v801 = vpack.c.b16 %v768, %v767
      %v802 = vpack.c.b16 %v770, %v769
      %835 = vmatpush.bf16.msra.mxu0 %v778
      %836 = vmatpush.bf16.msra.mxu0 %v777
      %837 = vmatpush.bf16.msra.mxu0 %v776
      %838 = vmatpush.bf16.msra.mxu0 %v775
      %839 = vmatpush.bf16.msra.mxu0 %v774
      %840 = vmatpush.bf16.msra.mxu0 %v773
      %841 = vmatpush.bf16.msra.mxu0 %v772
      %842 = vmatpush.bf16.msra.mxu0 %v771
      %843 = vmatmul.bf16.gmra.mxu0 %v572
      %v844 = vpop.f32.mrf.mxu0
      %v845 = vadd.f32 %v641, %v844
      %v846 = vpop.f32.mrf.mxu0
      %847 = vdwg.mxu0
      %848 = vmatpush.bf16.msra.mxu0 %v786
      %849 = vmatpush.bf16.msra.mxu0 %v785
      %850 = vmatpush.bf16.msra.mxu0 %v784
      %851 = vmatpush.bf16.msra.mxu0 %v783
      %852 = vmatpush.bf16.msra.mxu0 %v782
      %853 = vmatpush.bf16.msra.mxu0 %v781
      %854 = vmatpush.bf16.msra.mxu0 %v780
      %855 = vmatpush.bf16.msra.mxu0 %v779
      %856 = vmatmul.bf16.gmra.mxu0 %v573
      %v857 = vpop.f32.mrf.mxu0
      %v858 = vadd.f32 %v845, %v857
      %v859 = vpop.f32.mrf.mxu0
      %860 = vdwg.mxu0
      %861 = vmatpush.bf16.msra.mxu0 %v794
      %862 = vmatpush.bf16.msra.mxu0 %v793
      %863 = vmatpush.bf16.msra.mxu0 %v792
      %864 = vmatpush.bf16.msra.mxu0 %v791
      %865 = vmatpush.bf16.msra.mxu0 %v790
      %866 = vmatpush.bf16.msra.mxu0 %v789
      %867 = vmatpush.bf16.msra.mxu0 %v788
      %868 = vmatpush.bf16.msra.mxu0 %v787
      %869 = vmatmul.bf16.gmra.mxu0 %v574
      %v870 = vpop.f32.mrf.mxu0
      %v871 = vadd.f32 %v858, %v870
      %v872 = vpop.f32.mrf.mxu0
      %873 = vdwg.mxu0
      %874 = vmatpush.bf16.msra.mxu0 %v802
      %875 = vmatpush.bf16.msra.mxu0 %v801
      %876 = vmatpush.bf16.msra.mxu0 %v800
      %877 = vmatpush.bf16.msra.mxu0 %v799
      %878 = vmatpush.bf16.msra.mxu0 %v798
      %879 = vmatpush.bf16.msra.mxu0 %v797
      %880 = vmatpush.bf16.msra.mxu0 %v796
      %881 = vmatpush.bf16.msra.mxu0 %v795
      %882 = vmatmul.bf16.gmra.mxu0 %v575
      %v883 = vpop.f32.mrf.mxu0
      %v884 = vadd.f32 %v871, %v883
      %v885 = vpop.f32.mrf.mxu0
      %886 = vdwg.mxu0
      %vm887 = vcmask 23552
      %v888 = vsel %vm887, %v884, -inf
      %889 = vmax.xlane.f32.xlu0 %v888
      %v890 = vpop.xlane.xlu0 %889
      %v891 = vsub.f32 %v884, %v890
      %v892 = vmul.f32 %v891, 1.442695
      %v893 = vpow.pop %v892
      %v894 = vsel %vm887, %v893, 0.0
      %895 = vadd.xlane.f32.xlu0 %v894
      %v896 = vpop.xlane.xlu0 %895
      %v897 = vlog2.pop %v896
      %v898 = vmul.f32 %v897, 0.6931472
      %v899 = vadd.f32 %v890, %v898
      %v900 = vlaneseq
      %v901 = vand.u32 %v900, 127
      %v902 = vld [vmem:[%s304] sm:$0xff]
      %903 = vset.pattern.permute.xlu0 0
      %904 = vperm.xlu0 %903, %v902
      %v905 = vpop.permute.xlu0 %904
      %vm906 = vcmp.eq.s32.totalorder %v901, %v905
      %v907 = vsel %vm906, 1, 0
      %v908 = vcvt.s32.f32 %v907
      %v909 = vmul.f32 %v908, %v884
      %v910 = vsel %vm887, %v909, 0.0
      %911 = vadd.xlane.f32.xlu0 %v910
      %v912 = vpop.xlane.xlu0 %911
      %v913 = vsub.f32 %v899, %v912
      %914 = vst [vmem:[%s309] sm:$0xff] 0.0
      %915 = vst.msk [vmem:[%s309] sm:$0xff] %vm887, %v884
      %vm916 = vcmask 31768
      %917 = vst.msk [vmem:[%s309] sm:$0xff] %vm916, %v913
      %918 = vst [vmem:[%s309 + $0x8] sm:$0xff] %v565
      %p919 = scmp.lt.s32.totalorder %s18, 1
      %s920 = scalar_select %p919, %s18, 1
      %s921 = smul.addr %s920, 2
      %s922 = smul.addr %s921, 8
      %s923 = scalar_lea.vmem %s7, %s922
      // Predicated region
      $region49: #{hybrid_forward.1} parent=47 // pred_check
        %p924 = pneg %p198
      $region50: #{hybrid_forward.1} parent=47 // pred_check_branch
        %926 = sbr.rel (%p924) target = $region52
      $region51: #{hybrid_forward.1} parent=47 // pred_region
        _
      $region52: #{hybrid_forward.1} parent=47 // pred_fallthru
        _
    $region48: #{hybrid_forward.1} parent=5 // pred_fallthru
      _
    %p927 = scmp.le.s32.totalorder 2, %s13
    // Predicated region
    $region53: #{hybrid_forward.1} parent=5 // pred_check
      %p928 = pneg %p927
    $region54: #{hybrid_forward.1} parent=5 // pred_check_branch
      %930 = sbr.rel (%p928) target = $region56
    $region55: #{hybrid_forward.1} parent=5 // pred_region
      %s931 = ssub.s32 %s13, 2
      // Predicated region
      $region57: #{hybrid_forward.1} parent=55 // pred_check
        %p932 = pneg %p204
      $region58: #{hybrid_forward.1} parent=55 // pred_check_branch
        %934 = sbr.rel (%p932) target = $region60
      $region59: #{hybrid_forward.1} parent=55 // pred_region
        %p935 = scmp.lt.s32.totalorder %s19, 1
        %s936 = scalar_select %p935, %s19, 1
        %s937 = smul.addr %s936, 2
        %s938 = smul.addr %s937, 8
        %s939 = scalar_lea.vmem %s7, %s938
      $region60: #{hybrid_forward.1} parent=55 // pred_fallthru
        _
    $region56: #{hybrid_forward.1} parent=5 // pred_fallthru
      _
  $region6: #{hybrid_forward.1} parent=0 // loop_footer
    %s17 = sadd.s32 1, %s13
  $region7: #{hybrid_forward.1} parent=0 // loop_footer_branch
    %12 = sbr.rel target = $region3
  $region8: #{hybrid_forward.1} parent=0 // loop_exit
    _

</llo_original>
